<compile_context>
chip_gen: v7x
topology: tpu7x:2x2x1
jax: 0.10.0
libtpu: 0.0.40
codegen_flags: <defaults>
</compile_context>

<pallas_src>
import math

import jax
import jax.numpy as jnp
from jax.experimental import pallas as pl
from jax.experimental.pallas import tpu as pltpu


# ----------------------------------------------------------------------------
# Pallas kernel: gather + silu(silu(x @ W1 + b1) @ W2 + b2), fully fused
# ----------------------------------------------------------------------------
def _diff_emb_kernel(steps_ref, emb_ref, w_ref, b_ref, o_ref):
    tb = steps_ref.shape[0]                    # batch tile
    max_steps, d2 = emb_ref.shape              # (max_steps, 2*dim), bf16
    p = o_ref.shape[1]                         # proj_dim

    # ---- x = embedding[steps] via exact one-hot matmul (MXU) ------------------
    steps = steps_ref[...]                                              # (tb, 1) int32
    row_ids = jax.lax.broadcasted_iota(jnp.int32, (tb, max_steps), 1)   # (tb, max_steps)
    onehot = (row_ids == steps).astype(emb_ref.dtype)                   # bf16 0/1 (exact)
    # Single nonzero per row + f32 accumulation -> exact gather of the bf16 rows.
    x = jnp.dot(onehot, emb_ref[...], preferred_element_type=jnp.float32)  # (tb, 2*dim)

    # ---- static views into the packed bf16 weight slab [W1 ; W2] --------------
    w1 = w_ref[0:d2, :]                         # (2*dim, P) bf16
    w2 = w_ref[d2:d2 + p, :]                    # (P, P)     bf16
    b1 = b_ref[0:1, :]                          # (1, P)     f32
    b2 = b_ref[1:2, :]                          # (1, P)     f32

    def _silu(v):
        # v * sigmoid(v); exp + approximate reciprocal both live on the EUP slot.
        return v * pl.reciprocal(1.0 + jnp.exp(-v), approx=True)

    # ---- projection1 + SiLU (bf16 MXU operands, f32 accumulation) -------------
    h = _silu(jnp.dot(x.astype(jnp.bfloat16), w1,
                      preferred_element_type=jnp.float32) + b1)

    # ---- projection2 + SiLU ----------------------------------------------------
    y = _silu(jnp.dot(h.astype(jnp.bfloat16), w2,
                      preferred_element_type=jnp.float32) + b2)

    o_ref[...] = y.astype(o_ref.dtype)


# ----------------------------------------------------------------------------
# Packing (done ONCE at init -> one weight DMA + one tiny bias DMA per call)
# ----------------------------------------------------------------------------
def pack_weights(w1, w2):
    """[W1 ; W2] -> single bf16 (2*dim + P, P) slab."""
    return jnp.concatenate([w1, w2], axis=0).astype(jnp.bfloat16)


def pack_biases(b1, b2):
    """[b1 ; b2] -> f32 (2, P) slab (biases kept in full precision)."""
    return jnp.concatenate([b1, b2], axis=0).astype(jnp.float32)


# ----------------------------------------------------------------------------
# Wrapper
# ----------------------------------------------------------------------------
def diffusion_embedding_forward(diffusion_step, embedding, weights, biases, *, block_b=None):
    """diffusion_step: (B,) int/float; embedding: (max_steps, 2*dim) bf16;
    weights: bf16 slab from pack_weights(); biases: f32 slab from pack_biases().
    Returns (B, proj_dim) f32."""
    B = diffusion_step.shape[0]
    max_steps, d2 = embedding.shape
    p = weights.shape[1]
    assert weights.shape[0] == d2 + p, "weight slab shape mismatch"
    assert biases.shape == (2, p), "bias slab shape mismatch"

    if block_b is None:
        block_b = B
    assert B % block_b == 0 and (block_b % 8 == 0 or block_b == B)
    grid = (B // block_b,)

    # torch: diffusion_step.to(long); the gather itself happens inside the kernel.
    steps = diffusion_step.astype(jnp.int32).reshape(B, 1)

    flops = 2 * B * (max_steps * d2 + d2 * p + p * p) + 8 * B * p
    transcendentals = 4 * B * p
    bytes_accessed = (4 * B                      # step ids
                      + 2 * max_steps * d2       # bf16 table
                      + 2 * (d2 + p) * p         # bf16 weights
                      + 4 * 2 * p                # f32 biases
                      + 4 * B * p)               # f32 output

    return pl.pallas_call(
        _diff_emb_kernel,
        out_shape=jax.ShapeDtypeStruct((B, p), jnp.float32),
        grid=grid,
        in_specs=[
            pl.BlockSpec((block_b, 1), lambda i: (i, 0)),       # per-tile step ids
            pl.BlockSpec((max_steps, d2), lambda i: (0, 0)),    # bf16 sin/cos table (resident)
            pl.BlockSpec((d2 + p, p), lambda i: (0, 0)),        # bf16 [W1;W2] (resident)
            pl.BlockSpec((2, p), lambda i: (0, 0)),             # f32 [b1;b2] (resident)
        ],
        out_specs=pl.BlockSpec((block_b, p), lambda i: (i, 0)),
        compiler_params=pltpu.CompilerParams(
            dimension_semantics=("parallel",)),
        cost_estimate=pl.CostEstimate(
            flops=flops, transcendentals=transcendentals,
            bytes_accessed=bytes_accessed),
    )(steps, embedding, weights, biases)


# ----------------------------------------------------------------------------
# Module-equivalent init (plain JAX glue, matches torch __init__ semantics)
# ----------------------------------------------------------------------------
def build_embedding(dim, max_steps):
    # table = steps * 10.0 ** (dims * 4.0 / dim); cat([sin, cos], dim=1)
    steps = jnp.arange(max_steps, dtype=jnp.float32)[:, None]         # (max_steps, 1)
    dims = jnp.arange(dim, dtype=jnp.float32)[None, :]                # (1, dim)
    table = steps * (10.0 ** (dims * 4.0 / dim))                      # (max_steps, dim)
    return jnp.concatenate([jnp.sin(table), jnp.cos(table)], axis=1)  # (max_steps, 2*dim)


def init_params(key, dim, proj_dim):
    # nn.Linear default init: U(-1/sqrt(fan_in), 1/sqrt(fan_in)).
    in1 = dim * 2
    k1, k2, k3, k4 = jax.random.split(key, 4)
    bound1 = 1.0 / math.sqrt(in1)
    bound2 = 1.0 / math.sqrt(proj_dim)
    w1 = jax.random.uniform(k1, (in1, proj_dim), jnp.float32, -bound1, bound1)
    b1 = jax.random.uniform(k2, (1, proj_dim), jnp.float32, -bound1, bound1)
    w2 = jax.random.uniform(k3, (proj_dim, proj_dim), jnp.float32, -bound2, bound2)
    b2 = jax.random.uniform(k4, (1, proj_dim), jnp.float32, -bound2, bound2)
    return w1, b1, w2, b2


# ----------------------------------------------------------------------------
if __name__ == "__main__":
    dim = 64          # -> 2*dim = 128 input features (lane-dense)
    proj_dim = 128    # lane-dense output (full 128-lane stores, no masked vst)
    max_steps = 500
    batch = 16
    block_b = 8       # batch grid of 2 tiles; "parallel" axis for v7x megacore

    key = jax.random.PRNGKey(0)
    k_params, k_steps = jax.random.split(key)

    embedding_f32 = build_embedding(dim, max_steps)                   # (500, 128) f32
    embedding = embedding_f32.astype(jnp.bfloat16)                    # bf16 table, once at init

    w1, b1, w2, b2 = init_params(k_params, dim, proj_dim)
    weights = pack_weights(w1, w2)                                    # (256, 128) bf16, once
    biases = pack_biases(b1, b2)                                      # (2, 128) f32, once

    diffusion_step = jax.random.randint(k_steps, (batch,), 0, max_steps, dtype=jnp.int32)

    fwd = jax.jit(lambda s, e, w, b: diffusion_embedding_forward(s, e, w, b, block_b=block_b))
    out = jax.block_until_ready(fwd(diffusion_step, embedding, weights, biases))

    # Pure-JAX f32 reference (module semantics). Tolerance covers the bf16 table /
    # bf16 MXU operands and the approximate EUP reciprocal used for sigmoid in-kernel.
    def _silu(v):
        return v * jax.nn.sigmoid(v)

    x_ref = jnp.take(embedding_f32, diffusion_step, axis=0)
    ref = _silu(_silu(x_ref @ w1 + b1) @ w2 + b2)

    assert out.shape == (batch, proj_dim)
    assert jnp.allclose(out, ref, atol=2e-2, rtol=2e-2), \
        f"max abs err = {float(jnp.max(jnp.abs(out - ref)))}"
    print("KERNEL_OK")
</pallas_src>

<mosaic_0001>
module attributes {stable_mosaic.version = 11 : i64} {
  func.func @_diff_emb_kernel(%arg0: i32, %arg1: memref<8x1xi32, #tpu.memory_space<vmem>>, %arg2: memref<500x128xbf16, #tpu.memory_space<vmem>>, %arg3: memref<256x128xbf16, #tpu.memory_space<vmem>>, %arg4: memref<2x128xf32, #tpu.memory_space<vmem>>, %arg5: memref<8x128xf32, #tpu.memory_space<vmem>>) attributes {dimension_semantics = [#tpu.dimension_semantics<parallel>], iteration_bounds = array<i64: 2>, scalar_prefetch = 0 : i64, scratch_operands = 0 : i64, tpu.core_type = #tpu.core_type<tc>, window_params = [{transform_indices = @transform_0, window_bounds = array<i64: 8, 1>}, {pipeline_mode = #tpu.pipeline_mode<synchronous>, transform_indices = @transform_1, window_bounds = array<i64: 500, 128>}, {pipeline_mode = #tpu.pipeline_mode<synchronous>, transform_indices = @transform_2, window_bounds = array<i64: 256, 128>}, {pipeline_mode = #tpu.pipeline_mode<synchronous>, transform_indices = @transform_3, window_bounds = array<i64: 2, 128>}, {transform_indices = @transform_4, window_bounds = array<i64: 8, 128>}]} {
    %c0 = arith.constant 0 : index
    %c0_0 = arith.constant 0 : index
    %0 = vector.load %arg1[%c0, %c0_0] : memref<8x1xi32, #tpu.memory_space<vmem>>, vector<8x1xi32>
    %1 = tpu.iota {dimensions = array<i32: 1>} : vector<8x500xi32>
    %2 = vector.broadcast %0 : vector<8x1xi32> to vector<8x500xi32>
    %3 = arith.cmpi eq, %1, %2 : vector<8x500xi32>
    %4 = arith.extui %3 : vector<8x500xi1> to vector<8x500xi32>
    %5 = arith.sitofp %4 : vector<8x500xi32> to vector<8x500xf32>
    %6 = arith.truncf %5 : vector<8x500xf32> to vector<8x500xbf16>
    %c0_1 = arith.constant 0 : index
    %c0_2 = arith.constant 0 : index
    %7 = vector.load %arg2[%c0_1, %c0_2] : memref<500x128xbf16, #tpu.memory_space<vmem>>, vector<500x128xbf16>
    %cst = arith.constant dense<0.000000e+00> : vector<8x128xf32>
    %8 = tpu.matmul %6, %7, %cst {dimension_numbers = #tpu.dot_dimension_numbers<[1], [0], [0], [1], [0, 0, 1, 1], [], []>} : vector<8x500xbf16>, vector<500x128xbf16>, vector<8x128xf32> -> vector<8x128xf32>
    %c0_3 = arith.constant 0 : index
    %c0_4 = arith.constant 0 : index
    %9 = vector.load %arg3[%c0_3, %c0_4] : memref<256x128xbf16, #tpu.memory_space<vmem>>, vector<128x128xbf16>
    %c128 = arith.constant 128 : index
    %c0_5 = arith.constant 0 : index
    %10 = vector.load %arg3[%c128, %c0_5] : memref<256x128xbf16, #tpu.memory_space<vmem>>, vector<128x128xbf16>
    %c0_6 = arith.constant 0 : index
    %c0_7 = arith.constant 0 : index
    %11 = vector.load %arg4[%c0_6, %c0_7] : memref<2x128xf32, #tpu.memory_space<vmem>>, vector<1x128xf32>
    %c1 = arith.constant 1 : index
    %c0_8 = arith.constant 0 : index
    %12 = vector.load %arg4[%c1, %c0_8] : memref<2x128xf32, #tpu.memory_space<vmem>>, vector<1x128xf32>
    %13 = arith.truncf %8 : vector<8x128xf32> to vector<8x128xbf16>
    %cst_9 = arith.constant dense<0.000000e+00> : vector<8x128xf32>
    %14 = tpu.matmul %13, %9, %cst_9 {dimension_numbers = #tpu.dot_dimension_numbers<[1], [0], [0], [1], [0, 0, 1, 1], [], []>} : vector<8x128xbf16>, vector<128x128xbf16>, vector<8x128xf32> -> vector<8x128xf32>
    %15 = vector.broadcast %11 : vector<1x128xf32> to vector<8x128xf32>
    %16 = arith.addf %14, %15 : vector<8x128xf32>
    %cst_10 = arith.constant 0.000000e+00 : f32
    %17 = vector.broadcast %cst_10 : f32 to vector<8x128xf32>
    %18 = arith.subf %17, %16 : vector<8x128xf32>
    %19 = math.exp %18 : vector<8x128xf32>
    %cst_11 = arith.constant 1.000000e+00 : f32
    %20 = vector.broadcast %cst_11 : f32 to vector<8x128xf32>
    %21 = arith.addf %20, %19 : vector<8x128xf32>
    %22 = tpu.reciprocal %21 {approx = true} : vector<8x128xf32> -> vector<8x128xf32>
    %23 = arith.mulf %16, %22 : vector<8x128xf32>
    %24 = arith.truncf %23 : vector<8x128xf32> to vector<8x128xbf16>
    %cst_12 = arith.constant dense<0.000000e+00> : vector<8x128xf32>
    %25 = tpu.matmul %24, %10, %cst_12 {dimension_numbers = #tpu.dot_dimension_numbers<[1], [0], [0], [1], [0, 0, 1, 1], [], []>} : vector<8x128xbf16>, vector<128x128xbf16>, vector<8x128xf32> -> vector<8x128xf32>
    %26 = vector.broadcast %12 : vector<1x128xf32> to vector<8x128xf32>
    %27 = arith.addf %25, %26 : vector<8x128xf32>
    %cst_13 = arith.constant 0.000000e+00 : f32
    %28 = vector.broadcast %cst_13 : f32 to vector<8x128xf32>
    %29 = arith.subf %28, %27 : vector<8x128xf32>
    %30 = math.exp %29 : vector<8x128xf32>
    %cst_14 = arith.constant 1.000000e+00 : f32
    %31 = vector.broadcast %cst_14 : f32 to vector<8x128xf32>
    %32 = arith.addf %31, %30 : vector<8x128xf32>
    %33 = tpu.reciprocal %32 {approx = true} : vector<8x128xf32> -> vector<8x128xf32>
    %34 = arith.mulf %27, %33 : vector<8x128xf32>
    %c0_15 = arith.constant 0 : index
    %c0_16 = arith.constant 0 : index
    %35 = vector.load %arg5[%c0_15, %c0_16] : memref<8x128xf32, #tpu.memory_space<vmem>>, vector<8x128xf32>
    tpu.vector_store %arg5[%c0_15, %c0_16], %34 {strides = array<i32>} : memref<8x128xf32, #tpu.memory_space<vmem>>, vector<8x128xf32>,
    return
  }
  func.func @transform_0(%arg0: i32) -> (i32, i32) {
    %c0_i32 = arith.constant 0 : i32
    %c0_i32_0 = arith.constant 0 : i32
    return %arg0, %c0_i32 : i32, i32
  }
  func.func @transform_1(%arg0: i32) -> (i32, i32) {
    %c0_i32 = arith.constant 0 : i32
    %c0_i32_0 = arith.constant 0 : i32
    %c0_i32_1 = arith.constant 0 : i32
    return %c0_i32, %c0_i32_0 : i32, i32
  }
  func.func @transform_2(%arg0: i32) -> (i32, i32) {
    %c0_i32 = arith.constant 0 : i32
    %c0_i32_0 = arith.constant 0 : i32
    %c0_i32_1 = arith.constant 0 : i32
    return %c0_i32, %c0_i32_0 : i32, i32
  }
  func.func @transform_3(%arg0: i32) -> (i32, i32) {
    %c0_i32 = arith.constant 0 : i32
    %c0_i32_0 = arith.constant 0 : i32
    %c0_i32_1 = arith.constant 0 : i32
    return %c0_i32, %c0_i32_0 : i32, i32
  }
  func.func @transform_4(%arg0: i32) -> (i32, i32) {
    %c0_i32 = arith.constant 0 : i32
    %c0_i32_0 = arith.constant 0 : i32
    return %arg0, %c0_i32 : i32, i32
  }
}

</mosaic_0001>

<llo_original>
// kernel: _lambda_.1
$region0: #{_lambda_.1}
  #allocation0 [shape = 'u32[]', space=smem, size = 0x4, offset = 0x4, fixed_abs, tag = 'smem constant byte address 0x4 - core index']
  #allocation1 [shape = 'u32[144,128]{1,0:T(1,128)}', space=vmem, size = 0x12000, scoped, tag = 'internal scratch']
  %s0 = inlined_call_operand.vmem [shape: s32[16,1], index: 0, kind: input, shape index: {}]
  %s1 = inlined_call_operand.hbm [shape: bf16[500,128], index: 1, kind: input, shape index: {}]
  %s2 = inlined_call_operand.hbm [shape: bf16[256,128], index: 2, kind: input, shape index: {}]
  %s3 = inlined_call_operand.vmem [shape: f32[2,128], index: 3, kind: input, shape index: {}]
  %s4 = inlined_call_operand.hbm [shape: f32[16,128], index: 4, kind: output, shape index: {}]
  %s5 = sld [smem:[#allocation0]]
  $region57: #{_lambda_.1} parent=0
    _
  %s7 = ssub.s32 1, %s5
  %s8 = scalar_select 0, %s7, %s5
  $region1: #{_lambda_.1} parent=0
    #allocation2 [shape = 'u8[129024]{0}', space=vmem, size = 0x1f800, scoped, tag = 'input window, operand 1, single buffered']
    #allocation3 [shape = 's32[2]{0}', space=sflag, size = 0x8, scoped, tag = 'scoped memory for _lambda_.1']
    #allocation4 [shape = 's32[2]{0}', space=sflag, size = 0x8, scoped, tag = 'scoped memory for _lambda_.1']
    #allocation5 [shape = 'u8[65536]{0}', space=vmem, size = 0x10000, scoped, tag = 'input window, operand 2, single buffered']
    #allocation6 [shape = 's32[1]{0}', space=sflag, size = 0x4, scoped, tag = 'scoped memory for _lambda_.1']
    #allocation7 [shape = 'u8[8192]{0}', space=vmem, size = 0x2000, scoped, tag = 'output window, operand 0']
    %9 = vsyncpa [#allocation3], 0
    %10 = vsyncpa [#allocation6], 0
    %11 = vsyncpa [#allocation4], 0
    %s12 = scalar_lea.sflag [#allocation4], 1
    %13 = vsyncpa %s12, 0
    loop: start=0, step=1, limit=4
    $region2: #{_lambda_.1} parent=1 // loop_pre_header
      _
    $region3: #{_lambda_.1} parent=1 // loop_header
      %s15 = sphi 0, %s19
      %p16 = scmp.ge.s32.totalorder %s15, 4
      %s25 = sphi 0, %s27
      %s28 = sphi 0, %s25
      %s29 = sphi 0, %s28
      %s45 = sphi 0, %s29
      %s49 = sphi 0, %s49
      %s51 = sphi 0, %s49
      %s52 = sphi 0, %s51
      %s66 = sphi 0, %s52
      %s70 = sphi 0, %s70
      %s72 = sphi 0, %s70
      %s73 = sphi 0, %s72
      %s87 = sphi 0, %s73
      %s91 = sphi 0, %s91
      %s93 = sphi 0, %s91
      %s94 = sphi 0, %s93
      %s108 = sphi 0, %s94
      %s114 = sphi 0, %s116
      %s117 = sphi 0, %s114
      %s118 = sphi 0, %s117
      %s134 = sphi 0, %s118
    $region4: #{_lambda_.1} parent=1 // loop_header_branch
      %18 = sbr.rel (%p16) target = $region8
    $region5: #{_lambda_.1} parent=1 // loop_body
      %s20 = ssub.s32 %s15, 1
      %s21 = ssub.s32 %s15, 2
      %s22 = sadd.s32 %s15, 1
      %s23 = ssub.s32 %s15, %s22
      %p24 = scmp.eq.s32.totalorder %s23, 0
      %s26 = sadd.s32 %s25, 1
      %s27 = scalar_select %p24, %s25, %s26
      %p30 = pneg %p24
      %p31 = scmp.eq.s32.totalorder %s15, 1
      %p32 = por %p30, %p31
      %p33 = scmp.ne.s32.totalorder %s25, %s28
      %p34 = scmp.eq.s32.totalorder %s15, 0
      %p35 = por %p33, %p34
      %p36 = scmp.ne.s32.totalorder %s25, %s28
      %p37 = scmp.eq.s32.totalorder %s20, 1
      %p38 = por %p36, %p37
      %p39 = scmp.ne.s32.totalorder %s28, %s29
      %p40 = scmp.eq.s32.totalorder %s20, 0
      %p41 = por %p39, %p40
      %p42 = scmp.ne.s32.totalorder %s28, %s29
      %p43 = scmp.eq.s32.totalorder %s21, 1
      %p44 = por %p42, %p43
      %p46 = scmp.ne.s32.totalorder %s29, %s45
      %p47 = scmp.eq.s32.totalorder %s21, 0
      %p48 = por %p46, %p47
      %s50 = sadd.s32 %s49, 1
      %p53 = scmp.eq.s32.totalorder %s15, 1
      %p54 = scmp.ne.s32.totalorder %s49, %s51
      %p55 = scmp.eq.s32.totalorder %s15, 0
      %p56 = por %p54, %p55
      %p57 = scmp.ne.s32.totalorder %s49, %s51
      %p58 = scmp.eq.s32.totalorder %s20, 1
      %p59 = por %p57, %p58
      %p60 = scmp.ne.s32.totalorder %s51, %s52
      %p61 = scmp.eq.s32.totalorder %s20, 0
      %p62 = por %p60, %p61
      %p63 = scmp.ne.s32.totalorder %s51, %s52
      %p64 = scmp.eq.s32.totalorder %s21, 1
      %p65 = por %p63, %p64
      %p67 = scmp.ne.s32.totalorder %s52, %s66
      %p68 = scmp.eq.s32.totalorder %s21, 0
      %p69 = por %p67, %p68
      %s71 = sadd.s32 %s70, 1
      %p74 = scmp.eq.s32.totalorder %s15, 1
      %p75 = scmp.ne.s32.totalorder %s70, %s72
      %p76 = scmp.eq.s32.totalorder %s15, 0
      %p77 = por %p75, %p76
      %p78 = scmp.ne.s32.totalorder %s70, %s72
      %p79 = scmp.eq.s32.totalorder %s20, 1
      %p80 = por %p78, %p79
      %p81 = scmp.ne.s32.totalorder %s72, %s73
      %p82 = scmp.eq.s32.totalorder %s20, 0
      %p83 = por %p81, %p82
      %p84 = scmp.ne.s32.totalorder %s72, %s73
      %p85 = scmp.eq.s32.totalorder %s21, 1
      %p86 = por %p84, %p85
      %p88 = scmp.ne.s32.totalorder %s73, %s87
      %p89 = scmp.eq.s32.totalorder %s21, 0
      %p90 = por %p88, %p89
      %s92 = sadd.s32 %s91, 1
      %p95 = scmp.eq.s32.totalorder %s15, 1
      %p96 = scmp.ne.s32.totalorder %s91, %s93
      %p97 = scmp.eq.s32.totalorder %s15, 0
      %p98 = por %p96, %p97
      %p99 = scmp.ne.s32.totalorder %s91, %s93
      %p100 = scmp.eq.s32.totalorder %s20, 1
      %p101 = por %p99, %p100
      %p102 = scmp.ne.s32.totalorder %s93, %s94
      %p103 = scmp.eq.s32.totalorder %s20, 0
      %p104 = por %p102, %p103
      %p105 = scmp.ne.s32.totalorder %s93, %s94
      %p106 = scmp.eq.s32.totalorder %s21, 1
      %p107 = por %p105, %p106
      %p109 = scmp.ne.s32.totalorder %s94, %s108
      %p110 = scmp.eq.s32.totalorder %s21, 0
      %p111 = por %p109, %p110
      %s112 = ssub.s32 %s15, %s22
      %p113 = scmp.eq.s32.totalorder %s112, 0
      %s115 = sadd.s32 %s114, 1
      %s116 = scalar_select %p113, %s114, %s115
      %p119 = pneg %p113
      %p120 = scmp.eq.s32.totalorder %s15, 1
      %p121 = por %p119, %p120
      %p122 = scmp.ne.s32.totalorder %s114, %s117
      %p123 = scmp.eq.s32.totalorder %s15, 0
      %p124 = por %p122, %p123
      %p125 = scmp.ne.s32.totalorder %s114, %s117
      %p126 = scmp.eq.s32.totalorder %s20, 1
      %p127 = por %p125, %p126
      %p128 = scmp.ne.s32.totalorder %s117, %s118
      %p129 = scmp.eq.s32.totalorder %s20, 0
      %p130 = por %p128, %p129
      %p131 = scmp.ne.s32.totalorder %s117, %s118
      %p132 = scmp.eq.s32.totalorder %s21, 1
      %p133 = por %p131, %p132
      %p135 = scmp.ne.s32.totalorder %s118, %s134
      %p136 = scmp.eq.s32.totalorder %s21, 0
      %p137 = por %p135, %p136
      %p138 = scmp.le.s32.totalorder 1, %s15
      %p139 = scmp.lt.s32.totalorder %s15, 3
      %p140 = pnand %p138, %p139
      %p141 = pneg %p140
      // Predicated region
      $region9: #{_lambda_.1} parent=5 // pred_check
        _
      $region10: #{_lambda_.1} parent=5 // pred_check_branch
        %143 = sbr.rel (%p140) target = $region12
      $region11: #{_lambda_.1} parent=5 // pred_region
        %s144 = ssub.s32 %s15, 1
        // Predicated region
        $region13: #{_lambda_.1} parent=11 // pred_check
          %p145 = pneg %p62
        $region14: #{_lambda_.1} parent=11 // pred_check_branch
          %147 = sbr.rel (%p145) target = $region16
        $region15: #{_lambda_.1} parent=11 // pred_region
          %s149 = ssub.s32 4032, 4032
          %150 = vsyncadd [#allocation3], %s149
          %s151 = sshll.u32 [#allocation2], 4
          %s152 = int_to_ptr.vmem [resolvable:$true] %s151
          %157 = dma.hbm_to_vmem [thread:$0]  %s1, 4032, %s152, [#allocation3], 64, 64, 4
        $region16: #{_lambda_.1} parent=11 // pred_fallthru
          _
        // Predicated region
        $region17: #{_lambda_.1} parent=11 // pred_check
          %p158 = pneg %p83
        $region18: #{_lambda_.1} parent=11 // pred_check_branch
          %160 = sbr.rel (%p158) target = $region20
        $region19: #{_lambda_.1} parent=11 // pred_region
          %s162 = ssub.s32 2048, 2048
          %163 = vsyncadd [#allocation6], %s162
          %s164 = sshll.u32 [#allocation5], 4
          %s165 = int_to_ptr.vmem [resolvable:$true] %s164
          %170 = dma.hbm_to_vmem [thread:$0]  %s2, 2048, %s165, [#allocation6], 64, 64, 4
        $region20: #{_lambda_.1} parent=11 // pred_fallthru
          _
        // Predicated region
        $region21: #{_lambda_.1} parent=11 // pred_check
          %p171 = pneg %p104
        $region22: #{_lambda_.1} parent=11 // pred_check_branch
          %173 = sbr.rel (%p171) target = $region24
        $region23: #{_lambda_.1} parent=11 // pred_region
          _
        $region24: #{_lambda_.1} parent=11 // pred_fallthru
          _
      $region12: #{_lambda_.1} parent=5 // pred_fallthru
        _
      %p174 = scmp.lt.s32.totalorder %s15, 2
      // Predicated region
      $region25: #{_lambda_.1} parent=5 // pred_check
        %p175 = pneg %p174
      $region26: #{_lambda_.1} parent=5 // pred_check_branch
        %177 = sbr.rel (%p175) target = $region28
      $region27: #{_lambda_.1} parent=5 // pred_region
        // Predicated region
        $region29: #{_lambda_.1} parent=27 // pred_check
          %p178 = pneg %p35
        $region30: #{_lambda_.1} parent=27 // pred_check_branch
          %180 = sbr.rel (%p178) target = $region32
        $region31: #{_lambda_.1} parent=27 // pred_region
          %p181 = scmp.lt.s32.totalorder %s15, 1
          %s182 = scalar_select %p181, %s15, 1
          %s183 = smul.addr %s182, 8
          %s184 = scalar_lea.vmem %s0, %s183
        $region32: #{_lambda_.1} parent=27 // pred_fallthru
          _
      $region28: #{_lambda_.1} parent=5 // pred_fallthru
        _
      %p185 = scmp.le.s32.totalorder 1, %s15
      %p186 = scmp.lt.s32.totalorder %s15, 3
      %p187 = pnand %p185, %p186
      %p188 = pneg %p187
      // Predicated region
      $region33: #{_lambda_.1} parent=5 // pred_check
        _
      $region34: #{_lambda_.1} parent=5 // pred_check_branch
        %190 = sbr.rel (%p187) target = $region36
      $region35: #{_lambda_.1} parent=5 // pred_region
        %s191 = ssub.s32 %s15, 1
        // Predicated region
        $region37: #{_lambda_.1} parent=35 // pred_check
          %p192 = pneg %p62
        $region38: #{_lambda_.1} parent=35 // pred_check_branch
          %194 = sbr.rel (%p192) target = $region40
        $region39: #{_lambda_.1} parent=35 // pred_region
          %195 = dma.done [#allocation3], 4032
        $region40: #{_lambda_.1} parent=35 // pred_fallthru
          _
        // Predicated region
        $region41: #{_lambda_.1} parent=35 // pred_check
          %p196 = pneg %p83
        $region42: #{_lambda_.1} parent=35 // pred_check_branch
          %198 = sbr.rel (%p196) target = $region44
        $region43: #{_lambda_.1} parent=35 // pred_region
          %199 = dma.done [#allocation6], 2048
        $region44: #{_lambda_.1} parent=35 // pred_fallthru
          _
        %p200 = scmp.lt.s32.totalorder %s20, 1
        %s201 = scalar_select %p200, %s20, 1
        %s202 = smul.addr %s201, 8
        %s203 = scalar_lea.vmem %s0, %s202
        %p204 = pneg %p41
        %p205 = pneg %p38
        %p206 = pneg %p62
        %p207 = pneg %p59
        %p208 = pneg %p83
        %p209 = pneg %p80
        %p210 = pneg %p104
        %p211 = pneg %p101
        %p212 = pneg %p130
        %p213 = pneg %p127
        %s214 = sand.u32 %s117, 1
        %s215 = scalar_lea.sflag [#allocation4], %s214
        %s216 = sand.u32 %s117, 1
        %s217 = smul.addr %s216, 8
        %s218 = scalar_lea.vmem [#allocation7], %s217
        %p219 = scmp.lt.s32.totalorder %s20, 1
        %s220 = scalar_select %p219, %s20, 1
        %s221 = smul.addr %s220, 8
        %s222 = scalar_lea.vmem %s0, %s221
        %v224 = vld [vmem:[%s222] sm:$0xff]
        %v225 = vlaneseq
        %v226 = vand.u32 %v225, 127
        %v227 = vadd.s32 %v226, 128
        %v228 = vadd.s32 %v226, 256
        %v229 = vadd.s32 %v226, 384
        %230 = vset.pattern.permute.xlu0 0
        %231 = vperm.xlu0 %230, %v224
        %v232 = vpop.permute.xlu0 %231
        %vm233 = vcmp.eq.s32.totalorder %v226, %v232
        %vm234 = vcmp.eq.s32.totalorder %v227, %v232
        %vm235 = vcmp.eq.s32.totalorder %v228, %v232
        %vm236 = vcmp.eq.s32.totalorder %v229, %v232
        %v237 = vsel %vm233, 1, 0
        %v238 = vsel %vm234, 1, 0
        %v239 = vsel %vm235, 1, 0
        %v240 = vsel %vm236, 1, 0
        %v241 = vcvt.s32.f32 %v237
        %v242 = vcvt.s32.f32 %v238
        %v243 = vcvt.s32.f32 %v239
        %v244 = vcvt.s32.f32 %v240
        %v245 = vpack.c.bf16 %v241, %v241
        %v246 = vpack.c.bf16 %v242, %v242
        %v247 = vpack.c.bf16 %v243, %v243
        %v248 = vpack.c.bf16 %v244, %v244
        %v249 = vld [vmem:[#allocation2] sm:$0xf]
        %v250 = vld [vmem:[#allocation2 + $0x4] sm:$0xf]
        %v251 = vld [vmem:[#allocation2 + $0x8] sm:$0xf]
        %v252 = vld [vmem:[#allocation2 + $0xc] sm:$0xf]
        %v253 = vld [vmem:[#allocation2 + $0x10] sm:$0xf]
        %v254 = vld [vmem:[#allocation2 + $0x14] sm:$0xf]
        %v255 = vld [vmem:[#allocation2 + $0x18] sm:$0xf]
        %v256 = vld [vmem:[#allocation2 + $0x1c] sm:$0xf]
        %v257 = vld [vmem:[#allocation2 + $0x20] sm:$0xf]
        %v258 = vld [vmem:[#allocation2 + $0x24] sm:$0xf]
        %v259 = vld [vmem:[#allocation2 + $0x28] sm:$0xf]
        %v260 = vld [vmem:[#allocation2 + $0x2c] sm:$0xf]
        %v261 = vld [vmem:[#allocation2 + $0x30] sm:$0xf]
        %v262 = vld [vmem:[#allocation2 + $0x34] sm:$0xf]
        %v263 = vld [vmem:[#allocation2 + $0x38] sm:$0xf]
        %v264 = vld [vmem:[#allocation2 + $0x3c] sm:$0xf]
        %v265 = vld [vmem:[#allocation2 + $0x40] sm:$0xf]
        %v266 = vld [vmem:[#allocation2 + $0x44] sm:$0xf]
        %v267 = vld [vmem:[#allocation2 + $0x48] sm:$0xf]
        %v268 = vld [vmem:[#allocation2 + $0x4c] sm:$0xf]
        %v269 = vld [vmem:[#allocation2 + $0x50] sm:$0xf]
        %v270 = vld [vmem:[#allocation2 + $0x54] sm:$0xf]
        %v271 = vld [vmem:[#allocation2 + $0x58] sm:$0xf]
        %v272 = vld [vmem:[#allocation2 + $0x5c] sm:$0xf]
        %v273 = vld [vmem:[#allocation2 + $0x60] sm:$0xf]
        %v274 = vld [vmem:[#allocation2 + $0x64] sm:$0xf]
        %v275 = vld [vmem:[#allocation2 + $0x68] sm:$0xf]
        %v276 = vld [vmem:[#allocation2 + $0x6c] sm:$0xf]
        %v277 = vld [vmem:[#allocation2 + $0x70] sm:$0xf]
        %v278 = vld [vmem:[#allocation2 + $0x74] sm:$0xf]
        %v279 = vld [vmem:[#allocation2 + $0x78] sm:$0xf]
        %v280 = vld [vmem:[#allocation2 + $0x7c] sm:$0xf]
        %v281 = vld [vmem:[#allocation2 + $0x80] sm:$0xf]
        %v282 = vld [vmem:[#allocation2 + $0x84] sm:$0xf]
        %v283 = vld [vmem:[#allocation2 + $0x88] sm:$0xf]
        %v284 = vld [vmem:[#allocation2 + $0x8c] sm:$0xf]
        %v285 = vld [vmem:[#allocation2 + $0x90] sm:$0xf]
        %v286 = vld [vmem:[#allocation2 + $0x94] sm:$0xf]
        %v287 = vld [vmem:[#allocation2 + $0x98] sm:$0xf]
        %v288 = vld [vmem:[#allocation2 + $0x9c] sm:$0xf]
        %v289 = vld [vmem:[#allocation2 + $0xa0] sm:$0xf]
        %v290 = vld [vmem:[#allocation2 + $0xa4] sm:$0xf]
        %v291 = vld [vmem:[#allocation2 + $0xa8] sm:$0xf]
        %v292 = vld [vmem:[#allocation2 + $0xac] sm:$0xf]
        %v293 = vld [vmem:[#allocation2 + $0xb0] sm:$0xf]
        %v294 = vld [vmem:[#allocation2 + $0xb4] sm:$0xf]
        %v295 = vld [vmem:[#allocation2 + $0xb8] sm:$0xf]
        %v296 = vld [vmem:[#allocation2 + $0xbc] sm:$0xf]
        %v297 = vld [vmem:[#allocation2 + $0xc0] sm:$0xf]
        %v298 = vld [vmem:[#allocation2 + $0xc4] sm:$0xf]
        %v299 = vld [vmem:[#allocation2 + $0xc8] sm:$0xf]
        %v300 = vld [vmem:[#allocation2 + $0xcc] sm:$0xf]
        %v301 = vld [vmem:[#allocation2 + $0xd0] sm:$0xf]
        %v302 = vld [vmem:[#allocation2 + $0xd4] sm:$0xf]
        %v303 = vld [vmem:[#allocation2 + $0xd8] sm:$0xf]
        %v304 = vld [vmem:[#allocation2 + $0xdc] sm:$0xf]
        %v305 = vld [vmem:[#allocation2 + $0xe0] sm:$0xf]
        %v306 = vld [vmem:[#allocation2 + $0xe4] sm:$0xf]
        %v307 = vld [vmem:[#allocation2 + $0xe8] sm:$0xf]
        %v308 = vld [vmem:[#allocation2 + $0xec] sm:$0xf]
        %v309 = vld [vmem:[#allocation2 + $0xf0] sm:$0xf]
        %v310 = vld [vmem:[#allocation2 + $0xf4] sm:$0xf]
        %v311 = vld [vmem:[#allocation2 + $0xf8] sm:$0x3]
        %v375 = vunpack.c.l.b16 %v249
        %v376 = vunpack.c.l.b16 %v250
        %v377 = vunpack.c.l.b16 %v251
        %v378 = vunpack.c.l.b16 %v252
        %v379 = vunpack.c.l.b16 %v253
        %v380 = vunpack.c.l.b16 %v254
        %v381 = vunpack.c.l.b16 %v255
        %v382 = vunpack.c.l.b16 %v256
        %v383 = vunpack.c.l.b16 %v257
        %v384 = vunpack.c.l.b16 %v258
        %v385 = vunpack.c.l.b16 %v259
        %v386 = vunpack.c.l.b16 %v260
        %v387 = vunpack.c.l.b16 %v261
        %v388 = vunpack.c.l.b16 %v262
        %v389 = vunpack.c.l.b16 %v263
        %v390 = vunpack.c.l.b16 %v264
        %v391 = vunpack.c.l.b16 %v265
        %v392 = vunpack.c.l.b16 %v266
        %v393 = vunpack.c.l.b16 %v267
        %v394 = vunpack.c.l.b16 %v268
        %v395 = vunpack.c.l.b16 %v269
        %v396 = vunpack.c.l.b16 %v270
        %v397 = vunpack.c.l.b16 %v271
        %v398 = vunpack.c.l.b16 %v272
        %v399 = vunpack.c.l.b16 %v273
        %v400 = vunpack.c.l.b16 %v274
        %v401 = vunpack.c.l.b16 %v275
        %v402 = vunpack.c.l.b16 %v276
        %v403 = vunpack.c.l.b16 %v277
        %v404 = vunpack.c.l.b16 %v278
        %v405 = vunpack.c.l.b16 %v279
        %v406 = vunpack.c.l.b16 %v280
        %v407 = vunpack.c.l.b16 %v281
        %v408 = vunpack.c.l.b16 %v282
        %v409 = vunpack.c.l.b16 %v283
        %v410 = vunpack.c.l.b16 %v284
        %v411 = vunpack.c.l.b16 %v285
        %v412 = vunpack.c.l.b16 %v286
        %v413 = vunpack.c.l.b16 %v287
        %v414 = vunpack.c.l.b16 %v288
        %v415 = vunpack.c.l.b16 %v289
        %v416 = vunpack.c.l.b16 %v290
        %v417 = vunpack.c.l.b16 %v291
        %v418 = vunpack.c.l.b16 %v292
        %v419 = vunpack.c.l.b16 %v293
        %v420 = vunpack.c.l.b16 %v294
        %v421 = vunpack.c.l.b16 %v295
        %v422 = vunpack.c.l.b16 %v296
        %v423 = vunpack.c.l.b16 %v297
        %v424 = vunpack.c.l.b16 %v298
        %v425 = vunpack.c.l.b16 %v299
        %v426 = vunpack.c.l.b16 %v300
        %v427 = vunpack.c.l.b16 %v301
        %v428 = vunpack.c.l.b16 %v302
        %v429 = vunpack.c.l.b16 %v303
        %v430 = vunpack.c.l.b16 %v304
        %v431 = vunpack.c.l.b16 %v305
        %v432 = vunpack.c.l.b16 %v306
        %v433 = vunpack.c.l.b16 %v307
        %v434 = vunpack.c.l.b16 %v308
        %v435 = vunpack.c.l.b16 %v309
        %v436 = vunpack.c.l.b16 %v310
        %v437 = vunpack.c.l.b16 %v311
        %v438 = vpack.c.b16 %v376, %v375
        %v439 = vpack.c.b16 %v378, %v377
        %v440 = vpack.c.b16 %v380, %v379
        %v441 = vpack.c.b16 %v382, %v381
        %v442 = vpack.c.b16 %v384, %v383
        %v443 = vpack.c.b16 %v386, %v385
        %v444 = vpack.c.b16 %v388, %v387
        %v445 = vpack.c.b16 %v390, %v389
        %v446 = vpack.c.b16 %v392, %v391
        %v447 = vpack.c.b16 %v394, %v393
        %v448 = vpack.c.b16 %v396, %v395
        %v449 = vpack.c.b16 %v398, %v397
        %v450 = vpack.c.b16 %v400, %v399
        %v451 = vpack.c.b16 %v402, %v401
        %v452 = vpack.c.b16 %v404, %v403
        %v453 = vpack.c.b16 %v406, %v405
        %v454 = vpack.c.b16 %v408, %v407
        %v455 = vpack.c.b16 %v410, %v409
        %v456 = vpack.c.b16 %v412, %v411
        %v457 = vpack.c.b16 %v414, %v413
        %v458 = vpack.c.b16 %v416, %v415
        %v459 = vpack.c.b16 %v418, %v417
        %v460 = vpack.c.b16 %v420, %v419
        %v461 = vpack.c.b16 %v422, %v421
        %v462 = vpack.c.b16 %v424, %v423
        %v463 = vpack.c.b16 %v426, %v425
        %v464 = vpack.c.b16 %v428, %v427
        %v465 = vpack.c.b16 %v430, %v429
        %v466 = vpack.c.b16 %v432, %v431
        %v467 = vpack.c.b16 %v434, %v433
        %v468 = vpack.c.b16 %v436, %v435
        %v469 = vpack.c.b16 %v437, %v437
        %vm501 = vcmask 949248
        %v503 = vsel %vm501, %v248, 0
        %vm505 = vcmask 1041408
        %v507 = vsel %vm505, %v469, 0
        %509 = vmatprep.subr.bf16.mxu0 0
        %510 = vmatpush1.bf16.msra.mxu0 %v438
        %511 = vmatprep.subr.bf16.mxu0 0
        %512 = vmatpush1.bf16.msra.mxu0 %v439
        %513 = vmatprep.subr.bf16.mxu0 0
        %514 = vmatpush1.bf16.msra.mxu0 %v440
        %515 = vmatprep.subr.bf16.mxu0 0
        %516 = vmatpush1.bf16.msra.mxu0 %v441
        %517 = vmatprep.subr.bf16.mxu0 0
        %518 = vmatpush1.bf16.msra.mxu0 %v442
        %519 = vmatprep.subr.bf16.mxu0 0
        %520 = vmatpush1.bf16.msra.mxu0 %v443
        %521 = vmatprep.subr.bf16.mxu0 0
        %522 = vmatpush1.bf16.msra.mxu0 %v444
        %523 = vmatprep.subr.bf16.mxu0 0
        %524 = vmatpush1.bf16.msra.mxu0 %v445
        %525 = vmatprep.subr.bf16.mxu0 0
        %526 = vmatpush1.bf16.msra.mxu0 %v446
        %527 = vmatprep.subr.bf16.mxu0 0
        %528 = vmatpush1.bf16.msra.mxu0 %v447
        %529 = vmatprep.subr.bf16.mxu0 0
        %530 = vmatpush1.bf16.msra.mxu0 %v448
        %531 = vmatprep.subr.bf16.mxu0 0
        %532 = vmatpush1.bf16.msra.mxu0 %v449
        %533 = vmatprep.subr.bf16.mxu0 0
        %534 = vmatpush1.bf16.msra.mxu0 %v450
        %535 = vmatprep.subr.bf16.mxu0 0
        %536 = vmatpush1.bf16.msra.mxu0 %v451
        %537 = vmatprep.subr.bf16.mxu0 0
        %538 = vmatpush1.bf16.msra.mxu0 %v452
        %539 = vmatprep.subr.bf16.mxu0 0
        %540 = vmatpush1.bf16.msra.mxu0 %v453
        %541 = vmatprep.mubr.bf16.mxu0 %v246
        %542 = vmatmul.mubr.bf16.gmra.mrb[0].mxu0 %v245
        %v543 = vpop.f32.mrb[0].mxu0
        %v544 = vadd.f32 0.0, %v543
        %v545 = vpop.f32.mrb[0].mxu0
        %v546 = vpop.f32.mrb[0].mxu0
        %v547 = vpop.f32.mrb[0].mxu0
        %548 = vdwg.mxu0
        %549 = vmatprep.subr.bf16.mxu0 0
        %550 = vmatpush1.bf16.msra.mxu0 %v454
        %551 = vmatprep.subr.bf16.mxu0 0
        %552 = vmatpush1.bf16.msra.mxu0 %v455
        %553 = vmatprep.subr.bf16.mxu0 0
        %554 = vmatpush1.bf16.msra.mxu0 %v456
        %555 = vmatprep.subr.bf16.mxu0 0
        %556 = vmatpush1.bf16.msra.mxu0 %v457
        %557 = vmatprep.subr.bf16.mxu0 0
        %558 = vmatpush1.bf16.msra.mxu0 %v458
        %559 = vmatprep.subr.bf16.mxu0 0
        %560 = vmatpush1.bf16.msra.mxu0 %v459
        %561 = vmatprep.subr.bf16.mxu0 0
        %562 = vmatpush1.bf16.msra.mxu0 %v460
        %563 = vmatprep.subr.bf16.mxu0 0
        %564 = vmatpush1.bf16.msra.mxu0 %v461
        %565 = vmatprep.subr.bf16.mxu0 0
        %566 = vmatpush1.bf16.msra.mxu0 %v462
        %567 = vmatprep.subr.bf16.mxu0 0
        %568 = vmatpush1.bf16.msra.mxu0 %v463
        %569 = vmatprep.subr.bf16.mxu0 0
        %570 = vmatpush1.bf16.msra.mxu0 %v464
        %571 = vmatprep.subr.bf16.mxu0 0
        %572 = vmatpush1.bf16.msra.mxu0 %v465
        %573 = vmatprep.subr.bf16.mxu0 0
        %574 = vmatpush1.bf16.msra.mxu0 %v466
        %575 = vmatprep.subr.bf16.mxu0 0
        %576 = vmatpush1.bf16.msra.mxu0 %v467
        %577 = vmatprep.subr.bf16.mxu0 0
        %578 = vmatpush1.bf16.msra.mxu0 %v468
        %579 = vmatprep.subr.bf16.mxu0 0
        %580 = vmatpush1.bf16.msra.mxu0 %v507
        %581 = vmatprep.mubr.bf16.mxu0 %v503
        %582 = vmatmul.mubr.bf16.gmra.mrb[0].mxu0 %v247
        %v583 = vpop.f32.mrb[0].mxu0
        %v584 = vadd.f32 %v544, %v583
        %v585 = vpop.f32.mrb[0].mxu0
        %v586 = vpop.f32.mrb[0].mxu0
        %v587 = vpop.f32.mrb[0].mxu0
        %588 = vdwg.mxu0
        %v589 = vld [vmem:[#allocation5] sm:$0xf]
        %v590 = vld [vmem:[#allocation5 + $0x4] sm:$0xf]
        %v591 = vld [vmem:[#allocation5 + $0x8] sm:$0xf]
        %v592 = vld [vmem:[#allocation5 + $0xc] sm:$0xf]
        %v593 = vld [vmem:[#allocation5 + $0x10] sm:$0xf]
        %v594 = vld [vmem:[#allocation5 + $0x14] sm:$0xf]
        %v595 = vld [vmem:[#allocation5 + $0x18] sm:$0xf]
        %v596 = vld [vmem:[#allocation5 + $0x1c] sm:$0xf]
        %v597 = vld [vmem:[#allocation5 + $0x20] sm:$0xf]
        %v598 = vld [vmem:[#allocation5 + $0x24] sm:$0xf]
        %v599 = vld [vmem:[#allocation5 + $0x28] sm:$0xf]
        %v600 = vld [vmem:[#allocation5 + $0x2c] sm:$0xf]
        %v601 = vld [vmem:[#allocation5 + $0x30] sm:$0xf]
        %v602 = vld [vmem:[#allocation5 + $0x34] sm:$0xf]
        %v603 = vld [vmem:[#allocation5 + $0x38] sm:$0xf]
        %v604 = vld [vmem:[#allocation5 + $0x3c] sm:$0xf]
        %v605 = vld [vmem:[#allocation5 + $0x40] sm:$0xf]
        %v606 = vld [vmem:[#allocation5 + $0x44] sm:$0xf]
        %v607 = vld [vmem:[#allocation5 + $0x48] sm:$0xf]
        %v608 = vld [vmem:[#allocation5 + $0x4c] sm:$0xf]
        %v609 = vld [vmem:[#allocation5 + $0x50] sm:$0xf]
        %v610 = vld [vmem:[#allocation5 + $0x54] sm:$0xf]
        %v611 = vld [vmem:[#allocation5 + $0x58] sm:$0xf]
        %v612 = vld [vmem:[#allocation5 + $0x5c] sm:$0xf]
        %v613 = vld [vmem:[#allocation5 + $0x60] sm:$0xf]
        %v614 = vld [vmem:[#allocation5 + $0x64] sm:$0xf]
        %v615 = vld [vmem:[#allocation5 + $0x68] sm:$0xf]
        %v616 = vld [vmem:[#allocation5 + $0x6c] sm:$0xf]
        %v617 = vld [vmem:[#allocation5 + $0x70] sm:$0xf]
        %v618 = vld [vmem:[#allocation5 + $0x74] sm:$0xf]
        %v619 = vld [vmem:[#allocation5 + $0x78] sm:$0xf]
        %v620 = vld [vmem:[#allocation5 + $0x7c] sm:$0xf]
        %v621 = vld [vmem:[%s3] sm:$0x1]
        %v622 = vld [vmem:[%s3 + $0x1] sm:$0x1]
        %v623 = vpack.c.bf16 %v584, %v584
        %v624 = vlaneseq
        %v625 = vshrl.u32 %v624, 7
        %v626 = vsub.s32 0, %v625
        %v627 = vrot.slane %v621, %v626
        %v644 = vunpack.c.l.b16 %v589
        %v645 = vunpack.c.l.b16 %v590
        %v646 = vunpack.c.l.b16 %v591
        %v647 = vunpack.c.l.b16 %v592
        %v648 = vunpack.c.l.b16 %v593
        %v649 = vunpack.c.l.b16 %v594
        %v650 = vunpack.c.l.b16 %v595
        %v651 = vunpack.c.l.b16 %v596
        %v652 = vunpack.c.l.b16 %v597
        %v653 = vunpack.c.l.b16 %v598
        %v654 = vunpack.c.l.b16 %v599
        %v655 = vunpack.c.l.b16 %v600
        %v656 = vunpack.c.l.b16 %v601
        %v657 = vunpack.c.l.b16 %v602
        %v658 = vunpack.c.l.b16 %v603
        %v659 = vunpack.c.l.b16 %v604
        %v660 = vpack.c.b16 %v645, %v644
        %v661 = vpack.c.b16 %v647, %v646
        %v662 = vpack.c.b16 %v649, %v648
        %v663 = vpack.c.b16 %v651, %v650
        %v664 = vpack.c.b16 %v653, %v652
        %v665 = vpack.c.b16 %v655, %v654
        %v666 = vpack.c.b16 %v657, %v656
        %v667 = vpack.c.b16 %v659, %v658
        %676 = vmatprep.subr.bf16.mxu0 0
        %677 = vmatpush1.bf16.msra.mxu0 %v660
        %678 = vmatprep.subr.bf16.mxu0 0
        %679 = vmatpush1.bf16.msra.mxu0 %v661
        %680 = vmatprep.subr.bf16.mxu0 0
        %681 = vmatpush1.bf16.msra.mxu0 %v662
        %682 = vmatprep.subr.bf16.mxu0 0
        %683 = vmatpush1.bf16.msra.mxu0 %v663
        %684 = vmatprep.subr.bf16.mxu0 0
        %685 = vmatpush1.bf16.msra.mxu0 %v664
        %686 = vmatprep.subr.bf16.mxu0 0
        %687 = vmatpush1.bf16.msra.mxu0 %v665
        %688 = vmatprep.subr.bf16.mxu0 0
        %689 = vmatpush1.bf16.msra.mxu0 %v666
        %690 = vmatprep.subr.bf16.mxu0 0
        %691 = vmatpush1.bf16.msra.mxu0 %v667
        %692 = vmatprep.subr.bf16.mxu0 0
        %693 = vmatpush1.bf16.msra.mxu0 0
        %694 = vmatprep.subr.bf16.mxu0 0
        %695 = vmatpush1.bf16.msra.mxu0 0
        %696 = vmatprep.subr.bf16.mxu0 0
        %697 = vmatpush1.bf16.msra.mxu0 0
        %698 = vmatprep.subr.bf16.mxu0 0
        %699 = vmatpush1.bf16.msra.mxu0 0
        %700 = vmatprep.subr.bf16.mxu0 0
        %701 = vmatpush1.bf16.msra.mxu0 0
        %702 = vmatprep.subr.bf16.mxu0 0
        %703 = vmatpush1.bf16.msra.mxu0 0
        %704 = vmatprep.subr.bf16.mxu0 0
        %705 = vmatpush1.bf16.msra.mxu0 0
        %706 = vmatprep.subr.bf16.mxu0 0
        %707 = vmatpush1.bf16.msra.mxu0 0
        %708 = vmatprep.mubr.bf16.mxu0 0
        %709 = vmatmul.mubr.bf16.gmra.mrb[0].mxu0 %v623
        %v710 = vpop.f32.mrb[0].mxu0
        %v711 = vadd.f32 %v627, %v710
        %v712 = vpop.f32.mrb[0].mxu0
        %v713 = vpop.f32.mrb[0].mxu0
        %v714 = vpop.f32.mrb[0].mxu0
        %715 = vdwg.mxu0
        %v716 = vsub.f32 0.0, %v711
        %v717 = vmul.f32 %v716, 1.442695
        %v718 = vpow.pop %v717
        %v719 = vadd.f32 %v718, 1.0
        %v720 = vrcp.pop %v719
        %v721 = vmul.f32 %v711, %v720
        %v722 = vpack.c.bf16 %v721, %v721
        %v723 = vlaneseq
        %v724 = vshrl.u32 %v723, 7
        %v725 = vsub.s32 0, %v724
        %v726 = vrot.slane %v622, %v725
        %v743 = vunpack.c.l.b16 %v605
        %v744 = vunpack.c.l.b16 %v606
        %v745 = vunpack.c.l.b16 %v607
        %v746 = vunpack.c.l.b16 %v608
        %v747 = vunpack.c.l.b16 %v609
        %v748 = vunpack.c.l.b16 %v610
        %v749 = vunpack.c.l.b16 %v611
        %v750 = vunpack.c.l.b16 %v612
        %v751 = vunpack.c.l.b16 %v613
        %v752 = vunpack.c.l.b16 %v614
        %v753 = vunpack.c.l.b16 %v615
        %v754 = vunpack.c.l.b16 %v616
        %v755 = vunpack.c.l.b16 %v617
        %v756 = vunpack.c.l.b16 %v618
        %v757 = vunpack.c.l.b16 %v619
        %v758 = vunpack.c.l.b16 %v620
        %v759 = vpack.c.b16 %v744, %v743
        %v760 = vpack.c.b16 %v746, %v745
        %v761 = vpack.c.b16 %v748, %v747
        %v762 = vpack.c.b16 %v750, %v749
        %v763 = vpack.c.b16 %v752, %v751
        %v764 = vpack.c.b16 %v754, %v753
        %v765 = vpack.c.b16 %v756, %v755
        %v766 = vpack.c.b16 %v758, %v757
        %775 = vmatprep.subr.bf16.mxu0 0
        %776 = vmatpush1.bf16.msra.mxu0 %v759
        %777 = vmatprep.subr.bf16.mxu0 0
        %778 = vmatpush1.bf16.msra.mxu0 %v760
        %779 = vmatprep.subr.bf16.mxu0 0
        %780 = vmatpush1.bf16.msra.mxu0 %v761
        %781 = vmatprep.subr.bf16.mxu0 0
        %782 = vmatpush1.bf16.msra.mxu0 %v762
        %783 = vmatprep.subr.bf16.mxu0 0
        %784 = vmatpush1.bf16.msra.mxu0 %v763
        %785 = vmatprep.subr.bf16.mxu0 0
        %786 = vmatpush1.bf16.msra.mxu0 %v764
        %787 = vmatprep.subr.bf16.mxu0 0
        %788 = vmatpush1.bf16.msra.mxu0 %v765
        %789 = vmatprep.subr.bf16.mxu0 0
        %790 = vmatpush1.bf16.msra.mxu0 %v766
        %791 = vmatprep.subr.bf16.mxu0 0
        %792 = vmatpush1.bf16.msra.mxu0 0
        %793 = vmatprep.subr.bf16.mxu0 0
        %794 = vmatpush1.bf16.msra.mxu0 0
        %795 = vmatprep.subr.bf16.mxu0 0
        %796 = vmatpush1.bf16.msra.mxu0 0
        %797 = vmatprep.subr.bf16.mxu0 0
        %798 = vmatpush1.bf16.msra.mxu0 0
        %799 = vmatprep.subr.bf16.mxu0 0
        %800 = vmatpush1.bf16.msra.mxu0 0
        %801 = vmatprep.subr.bf16.mxu0 0
        %802 = vmatpush1.bf16.msra.mxu0 0
        %803 = vmatprep.subr.bf16.mxu0 0
        %804 = vmatpush1.bf16.msra.mxu0 0
        %805 = vmatprep.subr.bf16.mxu0 0
        %806 = vmatpush1.bf16.msra.mxu0 0
        %807 = vmatprep.mubr.bf16.mxu0 0
        %808 = vmatmul.mubr.bf16.gmra.mrb[0].mxu0 %v722
        %v809 = vpop.f32.mrb[0].mxu0
        %v810 = vadd.f32 %v726, %v809
        %v811 = vpop.f32.mrb[0].mxu0
        %v812 = vpop.f32.mrb[0].mxu0
        %v813 = vpop.f32.mrb[0].mxu0
        %814 = vdwg.mxu0
        %v815 = vsub.f32 0.0, %v810
        %v816 = vmul.f32 %v815, 1.442695
        %v817 = vpow.pop %v816
        %v818 = vadd.f32 %v817, 1.0
        %v819 = vrcp.pop %v818
        %v820 = vmul.f32 %v810, %v819
        %821 = vst [vmem:[%s218] sm:$0xff] %v820
        %s822 = sand.u32 %s117, 1
        %s823 = scalar_lea.sflag [#allocation4], %s822
        %s824 = sand.u32 %s117, 1
        %s825 = smul.addr %s824, 8
        %s826 = scalar_lea.vmem [#allocation7], %s825
        // Predicated region
        $region45: #{_lambda_.1} parent=35 // pred_check
          %p827 = pneg %p127
        $region46: #{_lambda_.1} parent=35 // pred_check_branch
          %829 = sbr.rel (%p827) target = $region48
        $region47: #{_lambda_.1} parent=35 // pred_region
          %s831 = ssub.s32 128, 128
          %832 = vsyncadd %s823, %s831
          %s833 = smul.addr %s20, 128
          %s834 = scalar_lea.hbm %s4, %s833
          %s836 = sshll.u32 %s826, 4
          %s837 = int_to_ptr.vmem [resolvable:$true] %s836
          %839 = dma.vmem_to_hbm [thread:$0]  %s837, 128, %s834, %s823
        $region48: #{_lambda_.1} parent=35 // pred_fallthru
          _
      $region36: #{_lambda_.1} parent=5 // pred_fallthru
        _
      %p840 = scmp.le.s32.totalorder 2, %s15
      // Predicated region
      $region49: #{_lambda_.1} parent=5 // pred_check
        %p841 = pneg %p840
      $region50: #{_lambda_.1} parent=5 // pred_check_branch
        %843 = sbr.rel (%p841) target = $region52
      $region51: #{_lambda_.1} parent=5 // pred_region
        %s844 = ssub.s32 %s15, 2
        // Predicated region
        $region53: #{_lambda_.1} parent=51 // pred_check
          %p845 = pneg %p133
        $region54: #{_lambda_.1} parent=51 // pred_check_branch
          %847 = sbr.rel (%p845) target = $region56
        $region55: #{_lambda_.1} parent=51 // pred_region
          %s848 = sand.u32 %s118, 1
          %s849 = scalar_lea.sflag [#allocation4], %s848
          %s850 = sand.u32 %s118, 1
          %s851 = smul.addr %s850, 8
          %s852 = scalar_lea.vmem [#allocation7], %s851
          %853 = dma.done %s849, 128
        $region56: #{_lambda_.1} parent=51 // pred_fallthru
          _
      $region52: #{_lambda_.1} parent=5 // pred_fallthru
        _
    $region6: #{_lambda_.1} parent=1 // loop_footer
      %s19 = sadd.s32 1, %s15
    $region7: #{_lambda_.1} parent=1 // loop_footer_branch
      %14 = sbr.rel target = $region3
    $region8: #{_lambda_.1} parent=1 // loop_exit
      _
    %854 = vsyncpa [#allocation3], 1
    %s855 = scalar_lea.sflag [#allocation3], 1
    %856 = vsyncpa %s855, 1
    %857 = vsyncpa [#allocation6], 1
    %858 = vsyncpa [#allocation4], 1
    %s859 = scalar_lea.sflag [#allocation4], 1
    %860 = vsyncpa %s859, 1

</llo_original>
